<compile_context>
chip_gen: v7x
topology: tpu7x:2x2x1
jax: 0.10.0
libtpu: 0.0.40
codegen_flags: <defaults>
</compile_context>

<pallas_src>
import functools
import numpy as np
import jax
import jax.numpy as jnp
from jax import lax
from jax.experimental import pallas as pl
from jax.experimental.pallas import tpu as pltpu


# ----------------------------------------------------------------------------
# host glue: bilinear interpolation matrix (torch align_corners=False)
# ----------------------------------------------------------------------------
def _bilinear_matrix(out_size: int, in_size: int) -> np.ndarray:
    if out_size == in_size:
        return np.eye(out_size, dtype=np.float64)
    scale = in_size / out_size
    i = np.arange(out_size, dtype=np.float64)
    src = (i + 0.5) * scale - 0.5
    src = np.maximum(src, 0.0)                       # torch clamps negative src
    i0 = np.minimum(np.floor(src).astype(np.int64), in_size - 1)
    i1 = np.minimum(i0 + 1, in_size - 1)
    lam1 = src - i0
    lam0 = 1.0 - lam1
    w = np.zeros((out_size, in_size), dtype=np.float64)
    w[np.arange(out_size), i0] += lam0
    w[np.arange(out_size), i1] += lam1
    return w


def _round_up(x: int, m: int) -> int:
    return ((x + m - 1) // m) * m


def _vmem_capacity_bytes() -> int:
    try:
        info = pltpu.get_tpu_info()
        cap = getattr(info, "vmem_capacity_bytes", None)
        if cap:
            return int(cap)
    except Exception:
        pass
    return 64 * 1024 * 1024      # conservative fallback (v7x per-core VMEM)


# ----------------------------------------------------------------------------
# host glue: folded interpolation + padding operands (shared across planes)
# ----------------------------------------------------------------------------
def _build_operands(inH, inW, vH, vW, pad_h, pad_w, cdt):
    pt, pb = pad_h
    plft, prgt = pad_w
    tH = vH + pt + pb
    tW = vW + plft + prgt
    TW = _round_up(tW, 128)                     # lane-dense output block width

    wh = _bilinear_matrix(vH, inH)              # (vH, inH) f64
    ww = _bilinear_matrix(vW, inW)              # (vW, inW) f64

    wh_pad = np.zeros((tH, inH), np.float64)    # zero rows on the pad border
    wh_pad[pt:pt + vH, :] = wh

    wwT_pad = np.zeros((inW, TW), np.float64)   # zero cols on border + lane pad
    wwT_pad[:, plft:plft + vW] = ww.T

    return (jnp.asarray(wh_pad, dtype=cdt),
            jnp.asarray(wwT_pad, dtype=cdt),
            tH, tW, TW)


# ----------------------------------------------------------------------------
# block size (planes / grid step): divisor of N*C, VMEM-budgeted, grid >= 4
# ----------------------------------------------------------------------------
def _pick_block_planes(nc, inH, inW, tH, TW, x_item, out_item, w_item,
                       vmem_cap, max_b=16):
    budget = max(4 * 1024 * 1024, int(0.30 * vmem_cap))
    # Pallas double-buffers BlockSpec inputs/outputs by default -> count 2x,
    # including the grid-invariant weight operands.
    const_bytes = 2 * w_item * (tH * inH + inW * TW)
    inter_bytes = 8 * (max(tH * inW, inH * TW) + 2 * tH * TW)   # f32 temporaries + slack

    def fits(b):
        stream = 2 * b * (inH * inW * x_item + tH * TW * out_item)
        return stream + const_bytes + inter_bytes <= budget

    divisors = [d for d in range(1, min(nc, max_b) + 1) if nc % d == 0]
    fitting = [d for d in divisors if fits(d)] or [1]
    # Prefer >= 4 grid steps (2 per v7x TensorCore), then >= 2 (pipelining).
    for min_grid in (4, 2):
        pref = [d for d in fitting if nc // d >= min_grid]
        if pref:
            return max(pref)
    return max(fitting)


# ----------------------------------------------------------------------------
# Pallas kernel: per-plane resize (2 MXU matmuls) + in-kernel border fill
# ----------------------------------------------------------------------------
def _kernel(wh_ref, wwT_ref, x_ref, o_ref, *, nb, h_first, pt, vH, plft, vW,
            padval, apply_pad, cdt):
    # wh   : (tH, inH)     H-pass matrix (zero rows on pad border)
    # wwT  : (inW, TW)     W-pass matrix, pre-transposed (zero border cols)
    # x    : (B, inH, inW) B planes
    # o    : (B, tH, TW)   lane-dense output slab
    wh = wh_ref[...]
    wwT = wwT_ref[...]
    tH, TW = o_ref.shape[1], o_ref.shape[2]

    if apply_pad:
        row = lax.broadcasted_iota(jnp.int32, (tH, TW), 0)
        col = lax.broadcasted_iota(jnp.int32, (tH, TW), 1)
        interior = ((row >= pt) & (row < pt + vH)
                    & (col >= plft) & (col < plft + vW))
        border_val = jnp.float32(padval)

    for b in range(nb):                         # static unroll over B planes
        xb = x_ref[b]                           # (inH, inW), native dtype
        if h_first:                             # upscale: contract on narrow inW first
            y = jnp.dot(wh, xb, preferred_element_type=jnp.float32)      # (tH, inW)
            z = jnp.dot(y.astype(cdt), wwT,
                        preferred_element_type=jnp.float32)              # (tH, TW)
        else:                                   # downscale: W-pass first
            y = jnp.dot(xb, wwT, preferred_element_type=jnp.float32)     # (inH, TW)
            z = jnp.dot(wh, y.astype(cdt),
                        preferred_element_type=jnp.float32)              # (tH, TW)
        if apply_pad:
            z = jnp.where(interior, z, border_val)
        o_ref[b] = z.astype(o_ref.dtype)


def _resize_and_pad_one(x, valid_size, margins, padval):
    """x: (N, C, H, W) -> (N, C, tH, tW).

    Reproduces torch F.pad's ordering quirk from the reference:
    margins[0] pads the LAST dim (W), margins[1] pads H.
    """
    N, C, inH, inW = (int(d) for d in x.shape)
    vH, vW = int(valid_size[0]), int(valid_size[1])
    pad_w = (int(margins[0][0]), int(margins[0][1]))
    pad_h = (int(margins[1][0]), int(margins[1][1]))

    orig_dtype = x.dtype
    if x.dtype == jnp.bfloat16:
        cdt = jnp.bfloat16
    else:
        cdt = jnp.float32
        if x.dtype != jnp.float32:
            x = x.astype(jnp.float32)
    out_dtype = x.dtype

    wh, wwT, tH, tW, TW = _build_operands(inH, inW, vH, vW, pad_h, pad_w, cdt)

    nc = N * C
    x3 = x.reshape(nc, inH, inW)                # pure view, no HBM copy

    x_item = x.dtype.itemsize
    out_item = jnp.dtype(out_dtype).itemsize
    w_item = jnp.dtype(cdt).itemsize
    vmem_cap = _vmem_capacity_bytes()
    B = _pick_block_planes(nc, inH, inW, tH, TW, x_item, out_item, w_item,
                           vmem_cap)
    n_steps = nc // B

    # Pick matmul order by per-plane FLOPs (upscale -> H-first is ~6x cheaper).
    flops_h_first = tH * inH * inW + tH * inW * TW
    flops_w_first = inH * inW * TW + tH * inH * TW
    h_first = flops_h_first <= flops_w_first

    apply_pad = (float(padval) != 0.0) and (max(pad_h) > 0 or max(pad_w) > 0)

    kernel = functools.partial(
        _kernel, nb=B, h_first=h_first, pt=pad_h[0], vH=vH,
        plft=pad_w[0], vW=vW, padval=float(padval), apply_pad=apply_pad,
        cdt=cdt)

    # VMEM footprint: double-buffered x/out blocks + double-buffered constants
    # + f32 temporaries (with slack).  Limit is generation-aware.
    fp = (2 * B * (inH * inW * x_item + tH * TW * out_item)
          + 2 * w_item * (tH * inH + inW * TW)
          + 8 * (max(tH * inW, inH * TW) + 2 * tH * TW))
    vmem_limit = int(min(int(0.85 * vmem_cap), max(16 << 20, 2 * fp)))

    out = pl.pallas_call(
        kernel,
        out_shape=jax.ShapeDtypeStruct((nc, tH, TW), out_dtype),
        grid_spec=pltpu.PrefetchScalarGridSpec(
            num_scalar_prefetch=0,
            grid=(n_steps,),
            in_specs=[
                pl.BlockSpec((tH, inH), lambda g: (0, 0)),          # Wh (resident)
                pl.BlockSpec((inW, TW), lambda g: (0, 0)),          # WwT (resident)
                pl.BlockSpec((B, inH, inW), lambda g: (g, 0, 0)),   # x planes
            ],
            out_specs=pl.BlockSpec((B, tH, TW), lambda g: (g, 0, 0)),
        ),
        compiler_params=pltpu.CompilerParams(
            dimension_semantics=("parallel",),
            vmem_limit_bytes=vmem_limit,
        ),
    )(wh, wwT, x3)

    if TW != tW:
        out = out[:, :, :tW]        # only remaining host-side copy (lane slice)
    out = out.reshape(N, C, tH, tW)
    if out.dtype != orig_dtype and jnp.issubdtype(orig_dtype, jnp.floating):
        out = out.astype(orig_dtype)
    return out


# ----------------------------------------------------------------------------
# module equivalent
# ----------------------------------------------------------------------------
class NekoResizeAndPadfill:
    def __init__(self, param):
        self.target_size = param["target_size"]
        self.margins = param.get("margins", [(4, 4), (4, 4)])
        self.padval = param.get("padval", 0)
        self.int_mode = param.get("interpolate_mode", "bilinear")
        # TODO(synk): only 'bilinear' interpolation is implemented.
        assert self.int_mode == "bilinear"
        self.valid_size = [t - m[0] - m[1]
                           for t, m in zip(self.target_size, self.margins)]

    def __call__(self, tensors, bmasks=None):
        # tensors: list of (N, C, H, W) arrays
        if bmasks is not None:
            tarlist = [jnp.concatenate([c, m], axis=1)
                       for c, m in zip(tensors, bmasks)]
        else:
            tarlist = tensors

        rt = [_resize_and_pad_one(t, self.valid_size, self.margins, self.padval)
              for t in tarlist]

        if bmasks is not None:
            # NOTE: original source indexes the python list (a bug); we apply
            # the intended per-tensor channel split instead.
            nch = tensors[0].shape[1]
            return [r[:, :nch] for r in rt], [r[:, nch:] for r in rt]
        return rt


# ----------------------------------------------------------------------------
if __name__ == "__main__":
    key = jax.random.PRNGKey(0)
    N, C, H, W = 2, 4, 16, 16
    x = jax.random.normal(key, (N, C, H, W), dtype=jnp.float32)

    module = NekoResizeAndPadfill({
        "target_size": [32, 32],
        "margins": [(4, 4), (4, 4)],
        "padval": 0.5,
        "interpolate_mode": "bilinear",
    })

    out = module([x])[0]
    out = jax.block_until_ready(out)
    assert out.shape == (N, C, 32, 32)

    # sanity check against a plain-JAX reference of the same math
    vH, vW = module.valid_size
    wh = jnp.asarray(_bilinear_matrix(vH, H), jnp.float32)
    ww = jnp.asarray(_bilinear_matrix(vW, W), jnp.float32)
    ref_core = jnp.einsum("ph,nchw,qw->ncpq", wh, x, ww)
    ref = jnp.pad(ref_core, ((0, 0), (0, 0), (4, 4), (4, 4)),
                  constant_values=0.5)
    np.testing.assert_allclose(np.asarray(out), np.asarray(ref),
                               rtol=1e-5, atol=1e-4)

    print("KERNEL_OK")
</pallas_src>

<mosaic_0001>
module attributes {stable_mosaic.version = 11 : i64} {
  func.func @_kernel(%arg0: i32, %arg1: memref<32x16xf32, #tpu.memory_space<vmem>>, %arg2: memref<16x128xf32, #tpu.memory_space<vmem>>, %arg3: memref<2x16x16xf32, #tpu.memory_space<vmem>>, %arg4: memref<2x32x128xf32, #tpu.memory_space<vmem>>) attributes {dimension_semantics = [#tpu.dimension_semantics<parallel>], iteration_bounds = array<i64: 4>, scalar_prefetch = 0 : i64, scratch_operands = 0 : i64, tpu.core_type = #tpu.core_type<tc>, window_params = [{pipeline_mode = #tpu.pipeline_mode<synchronous>, transform_indices = @transform_0, window_bounds = array<i64: 32, 16>}, {pipeline_mode = #tpu.pipeline_mode<synchronous>, transform_indices = @transform_1, window_bounds = array<i64: 16, 128>}, {transform_indices = @transform_2, window_bounds = array<i64: 2, 16, 16>}, {transform_indices = @transform_3, window_bounds = array<i64: 2, 32, 128>}]} {
    %c0 = arith.constant 0 : index
    %c0_0 = arith.constant 0 : index
    %0 = vector.load %arg1[%c0, %c0_0] : memref<32x16xf32, #tpu.memory_space<vmem>>, vector<32x16xf32>
    %c0_1 = arith.constant 0 : index
    %c0_2 = arith.constant 0 : index
    %1 = vector.load %arg2[%c0_1, %c0_2] : memref<16x128xf32, #tpu.memory_space<vmem>>, vector<16x128xf32>
    %2 = tpu.iota {dimensions = array<i32: 0>} : vector<32x128xi32>
    %3 = tpu.iota {dimensions = array<i32: 1>} : vector<32x128xi32>
    %c4_i32 = arith.constant 4 : i32
    %4 = vector.broadcast %c4_i32 : i32 to vector<32x128xi32>
    %5 = arith.cmpi sge, %2, %4 : vector<32x128xi32>
    %c28_i32 = arith.constant 28 : i32
    %6 = vector.broadcast %c28_i32 : i32 to vector<32x128xi32>
    %7 = arith.cmpi slt, %2, %6 : vector<32x128xi32>
    %8 = arith.andi %5, %7 : vector<32x128xi1>
    %c4_i32_3 = arith.constant 4 : i32
    %9 = vector.broadcast %c4_i32_3 : i32 to vector<32x128xi32>
    %10 = arith.cmpi sge, %3, %9 : vector<32x128xi32>
    %11 = arith.andi %8, %10 : vector<32x128xi1>
    %c28_i32_4 = arith.constant 28 : i32
    %12 = vector.broadcast %c28_i32_4 : i32 to vector<32x128xi32>
    %13 = arith.cmpi slt, %3, %12 : vector<32x128xi32>
    %14 = arith.andi %11, %13 : vector<32x128xi1>
    %c0_5 = arith.constant 0 : index
    %c0_6 = arith.constant 0 : index
    %c0_7 = arith.constant 0 : index
    %15 = vector.load %arg3[%c0_5, %c0_6, %c0_7] : memref<2x16x16xf32, #tpu.memory_space<vmem>>, vector<1x16x16xf32>
    %16 = vector.shape_cast %15 : vector<1x16x16xf32> to vector<16x16xf32>
    %cst = arith.constant dense<0.000000e+00> : vector<32x16xf32>
    %17 = tpu.matmul %0, %16, %cst {dimension_numbers = #tpu.dot_dimension_numbers<[1], [0], [0], [1], [0, 0, 1, 1], [], []>} : vector<32x16xf32>, vector<16x16xf32>, vector<32x16xf32> -> vector<32x16xf32>
    %cst_8 = arith.constant dense<0.000000e+00> : vector<32x128xf32>
    %18 = tpu.matmul %17, %1, %cst_8 {dimension_numbers = #tpu.dot_dimension_numbers<[1], [0], [0], [1], [0, 0, 1, 1], [], []>} : vector<32x16xf32>, vector<16x128xf32>, vector<32x128xf32> -> vector<32x128xf32>
    %cst_9 = arith.constant 5.000000e-01 : f32
    %19 = vector.broadcast %cst_9 : f32 to vector<32x128xf32>
    %20 = arith.select %14, %18, %19 : vector<32x128xi1>, vector<32x128xf32>
    %c0_10 = arith.constant 0 : index
    %c0_11 = arith.constant 0 : index
    %c0_12 = arith.constant 0 : index
    %21 = vector.load %arg4[%c0_10, %c0_11, %c0_12] : memref<2x32x128xf32, #tpu.memory_space<vmem>>, vector<1x32x128xf32>
    %22 = vector.shape_cast %21 : vector<1x32x128xf32> to vector<32x128xf32>
    %23 = vector.shape_cast %20 : vector<32x128xf32> to vector<1x32x128xf32>
    tpu.vector_store %arg4[%c0_10, %c0_11, %c0_12], %23 {strides = array<i32>} : memref<2x32x128xf32, #tpu.memory_space<vmem>>, vector<1x32x128xf32>,
    %c1 = arith.constant 1 : index
    %c0_13 = arith.constant 0 : index
    %c0_14 = arith.constant 0 : index
    %24 = vector.load %arg3[%c1, %c0_13, %c0_14] : memref<2x16x16xf32, #tpu.memory_space<vmem>>, vector<1x16x16xf32>
    %25 = vector.shape_cast %24 : vector<1x16x16xf32> to vector<16x16xf32>
    %cst_15 = arith.constant dense<0.000000e+00> : vector<32x16xf32>
    %26 = tpu.matmul %0, %25, %cst_15 {dimension_numbers = #tpu.dot_dimension_numbers<[1], [0], [0], [1], [0, 0, 1, 1], [], []>} : vector<32x16xf32>, vector<16x16xf32>, vector<32x16xf32> -> vector<32x16xf32>
    %cst_16 = arith.constant dense<0.000000e+00> : vector<32x128xf32>
    %27 = tpu.matmul %26, %1, %cst_16 {dimension_numbers = #tpu.dot_dimension_numbers<[1], [0], [0], [1], [0, 0, 1, 1], [], []>} : vector<32x16xf32>, vector<16x128xf32>, vector<32x128xf32> -> vector<32x128xf32>
    %cst_17 = arith.constant 5.000000e-01 : f32
    %28 = vector.broadcast %cst_17 : f32 to vector<32x128xf32>
    %29 = arith.select %14, %27, %28 : vector<32x128xi1>, vector<32x128xf32>
    %c1_18 = arith.constant 1 : index
    %c0_19 = arith.constant 0 : index
    %c0_20 = arith.constant 0 : index
    %30 = vector.load %arg4[%c1_18, %c0_19, %c0_20] : memref<2x32x128xf32, #tpu.memory_space<vmem>>, vector<1x32x128xf32>
    %31 = vector.shape_cast %30 : vector<1x32x128xf32> to vector<32x128xf32>
    %32 = vector.shape_cast %29 : vector<32x128xf32> to vector<1x32x128xf32>
    tpu.vector_store %arg4[%c1_18, %c0_19, %c0_20], %32 {strides = array<i32>} : memref<2x32x128xf32, #tpu.memory_space<vmem>>, vector<1x32x128xf32>,
    return
  }
  func.func @transform_0(%arg0: i32) -> (i32, i32) {
    %c0_i32 = arith.constant 0 : i32
    %c0_i32_0 = arith.constant 0 : i32
    %c0_i32_1 = arith.constant 0 : i32
    return %c0_i32, %c0_i32_0 : i32, i32
  }
  func.func @transform_1(%arg0: i32) -> (i32, i32) {
    %c0_i32 = arith.constant 0 : i32
    %c0_i32_0 = arith.constant 0 : i32
    %c0_i32_1 = arith.constant 0 : i32
    return %c0_i32, %c0_i32_0 : i32, i32
  }
  func.func @transform_2(%arg0: i32) -> (i32, i32, i32) {
    %c0_i32 = arith.constant 0 : i32
    %c0_i32_0 = arith.constant 0 : i32
    %c0_i32_1 = arith.constant 0 : i32
    return %arg0, %c0_i32, %c0_i32_0 : i32, i32, i32
  }
  func.func @transform_3(%arg0: i32) -> (i32, i32, i32) {
    %c0_i32 = arith.constant 0 : i32
    %c0_i32_0 = arith.constant 0 : i32
    %c0_i32_1 = arith.constant 0 : i32
    return %arg0, %c0_i32, %c0_i32_0 : i32, i32, i32
  }
}

</mosaic_0001>

<llo_original>
// kernel: tpu_custom_call.1
$region0: #{tpu_custom_call.1}
  #allocation0 [shape = 'u32[]', space=smem, size = 0x4, offset = 0x4, fixed_abs, tag = 'smem constant byte address 0x4 - core index']
  #allocation1 [shape = 'u32[144,128]{1,0:T(1,128)}', space=vmem, size = 0x12000, scoped, tag = 'internal scratch']
  %s0 = inlined_call_operand.vmem [shape: f32[32,16], index: 0, kind: input, shape index: {}]
  %s1 = inlined_call_operand.vmem [shape: f32[16,128], index: 1, kind: input, shape index: {}]
  %s2 = inlined_call_operand.hbm [shape: f32[8,16,16], index: 2, kind: input, shape index: {}]
  %s3 = inlined_call_operand.hbm [shape: f32[8,32,128], index: 3, kind: output, shape index: {}]
  %s4 = sld [smem:[#allocation0]]
  $region49: #{tpu_custom_call.1} parent=0
    _
  %s6 = ssub.s32 1, %s4
  %s7 = scalar_select 0, %s6, %s4
  $region1: #{tpu_custom_call.1} parent=0
    #allocation2 [shape = 'u8[32768]{0}', space=vmem, size = 0x8000, scoped, tag = 'input window, operand 2']
    #allocation3 [shape = 's32[2]{0}', space=sflag, size = 0x8, scoped, tag = 'scoped memory for tpu_custom_call.1']
    #allocation4 [shape = 's32[2]{0}', space=sflag, size = 0x8, scoped, tag = 'scoped memory for tpu_custom_call.1']
    #allocation5 [shape = 'u8[65536]{0}', space=vmem, size = 0x10000, scoped, tag = 'output window, operand 0']
    %8 = vsyncpa [#allocation3], 0
    %s9 = scalar_lea.sflag [#allocation3], 1
    %10 = vsyncpa %s9, 0
    %11 = vsyncpa [#allocation4], 0
    %s12 = scalar_lea.sflag [#allocation4], 1
    %13 = vsyncpa %s12, 0
    loop: start=0, step=1, limit=6
    $region2: #{tpu_custom_call.1} parent=1 // loop_pre_header
      _
    $region3: #{tpu_custom_call.1} parent=1 // loop_header
      %s15 = sphi 0, %s19
      %p16 = scmp.ge.s32.totalorder %s15, 6
      %s23 = sphi 0, %s23
      %s25 = sphi 0, %s23
      %s26 = sphi 0, %s25
      %s40 = sphi 0, %s26
      %s44 = sphi 0, %s44
      %s46 = sphi 0, %s44
      %s47 = sphi 0, %s46
      %s61 = sphi 0, %s47
      %s67 = sphi 0, %s69
      %s70 = sphi 0, %s67
      %s71 = sphi 0, %s70
      %s87 = sphi 0, %s71
      %s93 = sphi 0, %s95
      %s96 = sphi 0, %s93
      %s97 = sphi 0, %s96
      %s113 = sphi 0, %s97
    $region4: #{tpu_custom_call.1} parent=1 // loop_header_branch
      %18 = sbr.rel (%p16) target = $region8
    $region5: #{tpu_custom_call.1} parent=1 // loop_body
      %s20 = ssub.s32 %s15, 1
      %s21 = ssub.s32 %s15, 2
      %s22 = sadd.s32 %s15, 1
      %s24 = sadd.s32 %s23, 1
      %p27 = scmp.eq.s32.totalorder %s15, 3
      %p28 = scmp.ne.s32.totalorder %s23, %s25
      %p29 = scmp.eq.s32.totalorder %s15, 0
      %p30 = por %p28, %p29
      %p31 = scmp.ne.s32.totalorder %s23, %s25
      %p32 = scmp.eq.s32.totalorder %s20, 3
      %p33 = por %p31, %p32
      %p34 = scmp.ne.s32.totalorder %s25, %s26
      %p35 = scmp.eq.s32.totalorder %s20, 0
      %p36 = por %p34, %p35
      %p37 = scmp.ne.s32.totalorder %s25, %s26
      %p38 = scmp.eq.s32.totalorder %s21, 3
      %p39 = por %p37, %p38
      %p41 = scmp.ne.s32.totalorder %s26, %s40
      %p42 = scmp.eq.s32.totalorder %s21, 0
      %p43 = por %p41, %p42
      %s45 = sadd.s32 %s44, 1
      %p48 = scmp.eq.s32.totalorder %s15, 3
      %p49 = scmp.ne.s32.totalorder %s44, %s46
      %p50 = scmp.eq.s32.totalorder %s15, 0
      %p51 = por %p49, %p50
      %p52 = scmp.ne.s32.totalorder %s44, %s46
      %p53 = scmp.eq.s32.totalorder %s20, 3
      %p54 = por %p52, %p53
      %p55 = scmp.ne.s32.totalorder %s46, %s47
      %p56 = scmp.eq.s32.totalorder %s20, 0
      %p57 = por %p55, %p56
      %p58 = scmp.ne.s32.totalorder %s46, %s47
      %p59 = scmp.eq.s32.totalorder %s21, 3
      %p60 = por %p58, %p59
      %p62 = scmp.ne.s32.totalorder %s47, %s61
      %p63 = scmp.eq.s32.totalorder %s21, 0
      %p64 = por %p62, %p63
      %s65 = ssub.s32 %s15, %s22
      %p66 = scmp.eq.s32.totalorder %s65, 0
      %s68 = sadd.s32 %s67, 1
      %s69 = scalar_select %p66, %s67, %s68
      %p72 = pneg %p66
      %p73 = scmp.eq.s32.totalorder %s15, 3
      %p74 = por %p72, %p73
      %p75 = scmp.ne.s32.totalorder %s67, %s70
      %p76 = scmp.eq.s32.totalorder %s15, 0
      %p77 = por %p75, %p76
      %p78 = scmp.ne.s32.totalorder %s67, %s70
      %p79 = scmp.eq.s32.totalorder %s20, 3
      %p80 = por %p78, %p79
      %p81 = scmp.ne.s32.totalorder %s70, %s71
      %p82 = scmp.eq.s32.totalorder %s20, 0
      %p83 = por %p81, %p82
      %p84 = scmp.ne.s32.totalorder %s70, %s71
      %p85 = scmp.eq.s32.totalorder %s21, 3
      %p86 = por %p84, %p85
      %p88 = scmp.ne.s32.totalorder %s71, %s87
      %p89 = scmp.eq.s32.totalorder %s21, 0
      %p90 = por %p88, %p89
      %s91 = ssub.s32 %s15, %s22
      %p92 = scmp.eq.s32.totalorder %s91, 0
      %s94 = sadd.s32 %s93, 1
      %s95 = scalar_select %p92, %s93, %s94
      %p98 = pneg %p92
      %p99 = scmp.eq.s32.totalorder %s15, 3
      %p100 = por %p98, %p99
      %p101 = scmp.ne.s32.totalorder %s93, %s96
      %p102 = scmp.eq.s32.totalorder %s15, 0
      %p103 = por %p101, %p102
      %p104 = scmp.ne.s32.totalorder %s93, %s96
      %p105 = scmp.eq.s32.totalorder %s20, 3
      %p106 = por %p104, %p105
      %p107 = scmp.ne.s32.totalorder %s96, %s97
      %p108 = scmp.eq.s32.totalorder %s20, 0
      %p109 = por %p107, %p108
      %p110 = scmp.ne.s32.totalorder %s96, %s97
      %p111 = scmp.eq.s32.totalorder %s21, 3
      %p112 = por %p110, %p111
      %p114 = scmp.ne.s32.totalorder %s97, %s113
      %p115 = scmp.eq.s32.totalorder %s21, 0
      %p116 = por %p114, %p115
      %p117 = scmp.le.s32.totalorder 1, %s15
      %p118 = scmp.lt.s32.totalorder %s15, 5
      %p119 = pnand %p117, %p118
      %p120 = pneg %p119
      // Predicated region
      $region9: #{tpu_custom_call.1} parent=5 // pred_check
        _
      $region10: #{tpu_custom_call.1} parent=5 // pred_check_branch
        %122 = sbr.rel (%p119) target = $region12
      $region11: #{tpu_custom_call.1} parent=5 // pred_region
        %s123 = ssub.s32 %s15, 1
        // Predicated region
        $region13: #{tpu_custom_call.1} parent=11 // pred_check
          %p124 = pneg %p36
        $region14: #{tpu_custom_call.1} parent=11 // pred_check_branch
          %126 = sbr.rel (%p124) target = $region16
        $region15: #{tpu_custom_call.1} parent=11 // pred_region
          _
        $region16: #{tpu_custom_call.1} parent=11 // pred_fallthru
          _
        // Predicated region
        $region17: #{tpu_custom_call.1} parent=11 // pred_check
          %p127 = pneg %p57
        $region18: #{tpu_custom_call.1} parent=11 // pred_check_branch
          %129 = sbr.rel (%p127) target = $region20
        $region19: #{tpu_custom_call.1} parent=11 // pred_region
          _
        $region20: #{tpu_custom_call.1} parent=11 // pred_fallthru
          _
      $region12: #{tpu_custom_call.1} parent=5 // pred_fallthru
        _
      %p130 = scmp.lt.s32.totalorder %s15, 4
      // Predicated region
      $region21: #{tpu_custom_call.1} parent=5 // pred_check
        %p131 = pneg %p130
      $region22: #{tpu_custom_call.1} parent=5 // pred_check_branch
        %133 = sbr.rel (%p131) target = $region24
      $region23: #{tpu_custom_call.1} parent=5 // pred_region
        // Predicated region
        $region25: #{tpu_custom_call.1} parent=23 // pred_check
          %p134 = pneg %p77
        $region26: #{tpu_custom_call.1} parent=23 // pred_check_branch
          %136 = sbr.rel (%p134) target = $region28
        $region27: #{tpu_custom_call.1} parent=23 // pred_region
          %s137 = sand.u32 %s67, 1
          %s138 = scalar_lea.sflag [#allocation3], %s137
          %s139 = sand.u32 %s67, 1
          %s140 = smul.addr %s139, 32
          %s141 = scalar_lea.vmem [#allocation2], %s140
          %s142 = smul.u32 2, %s15
          %s144 = ssub.s32 512, 512
          %145 = vsyncadd %s138, %s144
          %s146 = smul.addr %s142, 2
          %s147 = smul.addr %s146, 128
          %s148 = scalar_lea.hbm %s2, %s147
          %s149 = sshll.u32 %s141, 4
          %s150 = int_to_ptr.vmem [resolvable:$true] %s149
          %155 = dma.hbm_to_vmem [thread:$0]  %s148, 512, %s150, %s138, 128, 128, 8
        $region28: #{tpu_custom_call.1} parent=23 // pred_fallthru
          _
      $region24: #{tpu_custom_call.1} parent=5 // pred_fallthru
        _
      %p156 = scmp.le.s32.totalorder 1, %s15
      %p157 = scmp.lt.s32.totalorder %s15, 5
      %p158 = pnand %p156, %p157
      %p159 = pneg %p158
      // Predicated region
      $region29: #{tpu_custom_call.1} parent=5 // pred_check
        _
      $region30: #{tpu_custom_call.1} parent=5 // pred_check_branch
        %161 = sbr.rel (%p158) target = $region32
      $region31: #{tpu_custom_call.1} parent=5 // pred_region
        %s162 = ssub.s32 %s15, 1
        %s163 = sand.u32 %s70, 1
        %s164 = scalar_lea.sflag [#allocation3], %s163
        %s165 = sand.u32 %s70, 1
        %s166 = smul.addr %s165, 32
        %s167 = scalar_lea.vmem [#allocation2], %s166
        // Predicated region
        $region33: #{tpu_custom_call.1} parent=31 // pred_check
          %p168 = pneg %p83
        $region34: #{tpu_custom_call.1} parent=31 // pred_check_branch
          %170 = sbr.rel (%p168) target = $region36
        $region35: #{tpu_custom_call.1} parent=31 // pred_region
          %171 = dma.done %s164, 512
        $region36: #{tpu_custom_call.1} parent=31 // pred_fallthru
          _
        %p172 = pneg %p36
        %p173 = pneg %p33
        %p174 = pneg %p57
        %p175 = pneg %p54
        %s176 = sand.u32 %s70, 1
        %s177 = scalar_lea.sflag [#allocation3], %s176
        %s178 = sand.u32 %s70, 1
        %s179 = smul.addr %s178, 32
        %s180 = scalar_lea.vmem [#allocation2], %s179
        %p181 = pneg %p83
        %p182 = pneg %p80
        %p183 = pneg %p109
        %p184 = pneg %p106
        %s185 = sand.u32 %s96, 1
        %s186 = scalar_lea.sflag [#allocation4], %s185
        %s187 = sand.u32 %s96, 1
        %s188 = smul.addr %s187, 64
        %s189 = scalar_lea.vmem [#allocation5], %s188
        %s190 = smul.u32 2, %s20
        %s191 = smul.u32 2, %s20
        %v192 = vld [vmem:[%s0] sm:$0xff]
        %v193 = vld [vmem:[%s0 + $0x8] sm:$0xff]
        %v194 = vld [vmem:[%s0 + $0x10] sm:$0xff]
        %v195 = vld [vmem:[%s0 + $0x18] sm:$0xff]
        %v196 = vld [vmem:[%s1] sm:$0xff]
        %v197 = vld [vmem:[%s1 + $0x8] sm:$0xff]
        %v198 = vlaneseq
        %v199 = vshrl.u32 %v198, 7
        %v200 = vadd.s32 %v199, 8
        %v201 = vadd.s32 %v199, 16
        %v202 = vadd.s32 %v199, 24
        %v203 = vlaneseq
        %v204 = vand.u32 %v203, 127
        %vm205 = vcmp.ge.s32.totalorder %v199, 4
        %vm206 = vcmp.ge.s32.totalorder %v200, 4
        %vm207 = vcmp.ge.s32.totalorder %v201, 4
        %vm208 = vcmp.ge.s32.totalorder %v202, 4
        %vm209 = vcmp.lt.s32.totalorder %v199, 28
        %vm210 = vcmp.lt.s32.totalorder %v200, 28
        %vm211 = vcmp.lt.s32.totalorder %v201, 28
        %vm212 = vcmp.lt.s32.totalorder %v202, 28
        %vm213 = vmand %vm205, %vm209
        %vm214 = vmand %vm206, %vm210
        %vm215 = vmand %vm207, %vm211
        %vm216 = vmand %vm208, %vm212
        %vm217 = vcmp.ge.s32.totalorder %v204, 4
        %vm218 = vmand %vm213, %vm217
        %vm219 = vmand %vm214, %vm217
        %vm220 = vmand %vm215, %vm217
        %vm221 = vmand %vm216, %vm217
        %vm222 = vcmp.lt.s32.totalorder %v204, 28
        %vm223 = vmand %vm218, %vm222
        %vm224 = vmand %vm219, %vm222
        %vm225 = vmand %vm220, %vm222
        %vm226 = vmand %vm221, %vm222
        %v227 = vld [vmem:[%s167] sm:$0xff]
        %v228 = vld [vmem:[%s167 + $0x8] sm:$0xff]
        %vm229 = vcmask 130048
        %v231 = vsel %vm229, %v192, 0
        %v234 = vsel %vm229, %v193, 0
        %v237 = vsel %vm229, %v194, 0
        %v240 = vsel %vm229, %v195, 0
        %242 = vmatprep.subr.mxu0 0.0
        %243 = vmatpush1.msra.mxu0 %v227
        %244 = vmatprep.subr.mxu0 0.0
        %245 = vmatpush1.msra.mxu0 %v228
        %246 = vmatprep.subr.mxu0 0.0
        %247 = vmatpush1.msra.mxu0 0.0
        %248 = vmatprep.subr.mxu0 0.0
        %249 = vmatpush1.msra.mxu0 0.0
        %250 = vmatprep.subr.mxu0 0.0
        %251 = vmatpush1.msra.mxu0 0.0
        %252 = vmatprep.subr.mxu0 0.0
        %253 = vmatpush1.msra.mxu0 0.0
        %254 = vmatprep.subr.mxu0 0.0
        %255 = vmatpush1.msra.mxu0 0.0
        %256 = vmatprep.subr.mxu0 0.0
        %257 = vmatpush1.msra.mxu0 0.0
        %258 = vmatprep.subr.mxu0 0.0
        %259 = vmatpush1.msra.mxu0 0.0
        %260 = vmatprep.subr.mxu0 0.0
        %261 = vmatpush1.msra.mxu0 0.0
        %262 = vmatprep.subr.mxu0 0.0
        %263 = vmatpush1.msra.mxu0 0.0
        %264 = vmatprep.subr.mxu0 0.0
        %265 = vmatpush1.msra.mxu0 0.0
        %266 = vmatprep.subr.mxu0 0.0
        %267 = vmatpush1.msra.mxu0 0.0
        %268 = vmatprep.subr.mxu0 0.0
        %269 = vmatpush1.msra.mxu0 0.0
        %270 = vmatprep.subr.mxu0 0.0
        %271 = vmatpush1.msra.mxu0 0.0
        %272 = vmatprep.subr.mxu0 0.0
        %273 = vmatpush1.msra.mxu0 0.0
        %274 = vmatprep.subr.mxu0 0.0
        %275 = vmatpush1.msra.mxu0 0.0
        %276 = vmatprep.subr.mxu0 0.0
        %277 = vmatpush1.msra.mxu0 0.0
        %278 = vmatprep.subr.mxu0 0.0
        %279 = vmatpush1.msra.mxu0 0.0
        %280 = vmatprep.subr.mxu0 0.0
        %281 = vmatpush1.msra.mxu0 0.0
        %282 = vmatprep.subr.mxu0 0.0
        %283 = vmatpush1.msra.mxu0 0.0
        %284 = vmatprep.subr.mxu0 0.0
        %285 = vmatpush1.msra.mxu0 0.0
        %286 = vmatprep.subr.mxu0 0.0
        %287 = vmatpush1.msra.mxu0 0.0
        %288 = vmatprep.subr.mxu0 0.0
        %289 = vmatpush1.msra.mxu0 0.0
        %290 = vmatprep.subr.mxu0 0.0
        %291 = vmatpush1.msra.mxu0 0.0
        %292 = vmatprep.subr.mxu0 0.0
        %293 = vmatpush1.msra.mxu0 0.0
        %294 = vmatprep.subr.mxu0 0.0
        %295 = vmatpush1.msra.mxu0 0.0
        %296 = vmatprep.subr.mxu0 0.0
        %297 = vmatpush1.msra.mxu0 0.0
        %298 = vmatprep.subr.mxu0 0.0
        %299 = vmatpush1.msra.mxu0 0.0
        %300 = vmatprep.subr.mxu0 0.0
        %301 = vmatpush1.msra.mxu0 0.0
        %302 = vmatprep.subr.mxu0 0.0
        %303 = vmatpush1.msra.mxu0 0.0
        %304 = vmatprep.subr.mxu0 0.0
        %305 = vmatpush1.msra.mxu0 0.0
        %306 = vmatprep.mubr.f32.mxu0 0.0
        %307 = vmatmul.mubr.f32.gmra.mrb[0].mxu0 %v231
        %v308 = vpop.f32.mrb[0].mxu0
        %v309 = vadd.f32 0.0, %v308
        %v310 = vpop.f32.mrb[0].mxu0
        %311 = vmatprep.mubr.f32.mxu0 0.0
        %312 = vmatmul.mubr.f32.gmra.mrb[0].mxu0 %v234
        %v313 = vpop.f32.mrb[0].mxu0
        %v314 = vadd.f32 0.0, %v313
        %v315 = vpop.f32.mrb[0].mxu0
        %316 = vmatprep.mubr.f32.mxu0 0.0
        %317 = vmatmul.mubr.f32.gmra.mrb[0].mxu0 %v237
        %v318 = vpop.f32.mrb[0].mxu0
        %v319 = vadd.f32 0.0, %v318
        %v320 = vpop.f32.mrb[0].mxu0
        %321 = vmatprep.mubr.f32.mxu0 0.0
        %322 = vmatmul.mubr.f32.gmra.mrb[0].mxu0 %v240
        %v323 = vpop.f32.mrb[0].mxu0
        %v324 = vadd.f32 0.0, %v323
        %v325 = vpop.f32.mrb[0].mxu0
        %326 = vdwg.mxu0
        %v328 = vsel %vm229, %v309, 0
        %v331 = vsel %vm229, %v314, 0
        %v334 = vsel %vm229, %v319, 0
        %v337 = vsel %vm229, %v324, 0
        %339 = vmatprep.subr.mxu0 0.0
        %340 = vmatpush1.msra.mxu0 %v196
        %341 = vmatprep.subr.mxu0 0.0
        %342 = vmatpush1.msra.mxu0 %v197
        %343 = vmatprep.subr.mxu0 0.0
        %344 = vmatpush1.msra.mxu0 0.0
        %345 = vmatprep.subr.mxu0 0.0
        %346 = vmatpush1.msra.mxu0 0.0
        %347 = vmatprep.subr.mxu0 0.0
        %348 = vmatpush1.msra.mxu0 0.0
        %349 = vmatprep.subr.mxu0 0.0
        %350 = vmatpush1.msra.mxu0 0.0
        %351 = vmatprep.subr.mxu0 0.0
        %352 = vmatpush1.msra.mxu0 0.0
        %353 = vmatprep.subr.mxu0 0.0
        %354 = vmatpush1.msra.mxu0 0.0
        %355 = vmatprep.subr.mxu0 0.0
        %356 = vmatpush1.msra.mxu0 0.0
        %357 = vmatprep.subr.mxu0 0.0
        %358 = vmatpush1.msra.mxu0 0.0
        %359 = vmatprep.subr.mxu0 0.0
        %360 = vmatpush1.msra.mxu0 0.0
        %361 = vmatprep.subr.mxu0 0.0
        %362 = vmatpush1.msra.mxu0 0.0
        %363 = vmatprep.subr.mxu0 0.0
        %364 = vmatpush1.msra.mxu0 0.0
        %365 = vmatprep.subr.mxu0 0.0
        %366 = vmatpush1.msra.mxu0 0.0
        %367 = vmatprep.subr.mxu0 0.0
        %368 = vmatpush1.msra.mxu0 0.0
        %369 = vmatprep.subr.mxu0 0.0
        %370 = vmatpush1.msra.mxu0 0.0
        %371 = vmatprep.subr.mxu0 0.0
        %372 = vmatpush1.msra.mxu0 0.0
        %373 = vmatprep.subr.mxu0 0.0
        %374 = vmatpush1.msra.mxu0 0.0
        %375 = vmatprep.subr.mxu0 0.0
        %376 = vmatpush1.msra.mxu0 0.0
        %377 = vmatprep.subr.mxu0 0.0
        %378 = vmatpush1.msra.mxu0 0.0
        %379 = vmatprep.subr.mxu0 0.0
        %380 = vmatpush1.msra.mxu0 0.0
        %381 = vmatprep.subr.mxu0 0.0
        %382 = vmatpush1.msra.mxu0 0.0
        %383 = vmatprep.subr.mxu0 0.0
        %384 = vmatpush1.msra.mxu0 0.0
        %385 = vmatprep.subr.mxu0 0.0
        %386 = vmatpush1.msra.mxu0 0.0
        %387 = vmatprep.subr.mxu0 0.0
        %388 = vmatpush1.msra.mxu0 0.0
        %389 = vmatprep.subr.mxu0 0.0
        %390 = vmatpush1.msra.mxu0 0.0
        %391 = vmatprep.subr.mxu0 0.0
        %392 = vmatpush1.msra.mxu0 0.0
        %393 = vmatprep.subr.mxu0 0.0
        %394 = vmatpush1.msra.mxu0 0.0
        %395 = vmatprep.subr.mxu0 0.0
        %396 = vmatpush1.msra.mxu0 0.0
        %397 = vmatprep.subr.mxu0 0.0
        %398 = vmatpush1.msra.mxu0 0.0
        %399 = vmatprep.subr.mxu0 0.0
        %400 = vmatpush1.msra.mxu0 0.0
        %401 = vmatprep.subr.mxu0 0.0
        %402 = vmatpush1.msra.mxu0 0.0
        %403 = vmatprep.mubr.f32.mxu0 0.0
        %404 = vmatmul.mubr.f32.gmra.mrb[0].mxu0 %v328
        %v405 = vpop.f32.mrb[0].mxu0
        %v406 = vadd.f32 0.0, %v405
        %v407 = vpop.f32.mrb[0].mxu0
        %408 = vmatprep.mubr.f32.mxu0 0.0
        %409 = vmatmul.mubr.f32.gmra.mrb[0].mxu0 %v331
        %v410 = vpop.f32.mrb[0].mxu0
        %v411 = vadd.f32 0.0, %v410
        %v412 = vpop.f32.mrb[0].mxu0
        %413 = vmatprep.mubr.f32.mxu0 0.0
        %414 = vmatmul.mubr.f32.gmra.mrb[0].mxu0 %v334
        %v415 = vpop.f32.mrb[0].mxu0
        %v416 = vadd.f32 0.0, %v415
        %v417 = vpop.f32.mrb[0].mxu0
        %418 = vmatprep.mubr.f32.mxu0 0.0
        %419 = vmatmul.mubr.f32.gmra.mrb[0].mxu0 %v337
        %v420 = vpop.f32.mrb[0].mxu0
        %v421 = vadd.f32 0.0, %v420
        %v422 = vpop.f32.mrb[0].mxu0
        %423 = vdwg.mxu0
        %v424 = vsel %vm223, %v406, 0.5
        %v425 = vsel %vm224, %v411, 0.5
        %v426 = vsel %vm225, %v416, 0.5
        %v427 = vsel %vm226, %v421, 0.5
        %428 = vst [vmem:[%s189] sm:$0xff] %v424
        %429 = vst [vmem:[%s189 + $0x8] sm:$0xff] %v425
        %430 = vst [vmem:[%s189 + $0x10] sm:$0xff] %v426
        %431 = vst [vmem:[%s189 + $0x18] sm:$0xff] %v427
        %s432 = scalar_lea.vmem %s167, 16 [#allocation2]
        %v433 = vld [vmem:[%s432] sm:$0xff]
        %v434 = vld [vmem:[%s432 + $0x8] sm:$0xff]
        %435 = vmatprep.subr.mxu0 0.0
        %436 = vmatpush1.msra.mxu0 %v433
        %437 = vmatprep.subr.mxu0 0.0
        %438 = vmatpush1.msra.mxu0 %v434
        %439 = vmatprep.subr.mxu0 0.0
        %440 = vmatpush1.msra.mxu0 0.0
        %441 = vmatprep.subr.mxu0 0.0
        %442 = vmatpush1.msra.mxu0 0.0
        %443 = vmatprep.subr.mxu0 0.0
        %444 = vmatpush1.msra.mxu0 0.0
        %445 = vmatprep.subr.mxu0 0.0
        %446 = vmatpush1.msra.mxu0 0.0
        %447 = vmatprep.subr.mxu0 0.0
        %448 = vmatpush1.msra.mxu0 0.0
        %449 = vmatprep.subr.mxu0 0.0
        %450 = vmatpush1.msra.mxu0 0.0
        %451 = vmatprep.subr.mxu0 0.0
        %452 = vmatpush1.msra.mxu0 0.0
        %453 = vmatprep.subr.mxu0 0.0
        %454 = vmatpush1.msra.mxu0 0.0
        %455 = vmatprep.subr.mxu0 0.0
        %456 = vmatpush1.msra.mxu0 0.0
        %457 = vmatprep.subr.mxu0 0.0
        %458 = vmatpush1.msra.mxu0 0.0
        %459 = vmatprep.subr.mxu0 0.0
        %460 = vmatpush1.msra.mxu0 0.0
        %461 = vmatprep.subr.mxu0 0.0
        %462 = vmatpush1.msra.mxu0 0.0
        %463 = vmatprep.subr.mxu0 0.0
        %464 = vmatpush1.msra.mxu0 0.0
        %465 = vmatprep.subr.mxu0 0.0
        %466 = vmatpush1.msra.mxu0 0.0
        %467 = vmatprep.subr.mxu0 0.0
        %468 = vmatpush1.msra.mxu0 0.0
        %469 = vmatprep.subr.mxu0 0.0
        %470 = vmatpush1.msra.mxu0 0.0
        %471 = vmatprep.subr.mxu0 0.0
        %472 = vmatpush1.msra.mxu0 0.0
        %473 = vmatprep.subr.mxu0 0.0
        %474 = vmatpush1.msra.mxu0 0.0
        %475 = vmatprep.subr.mxu0 0.0
        %476 = vmatpush1.msra.mxu0 0.0
        %477 = vmatprep.subr.mxu0 0.0
        %478 = vmatpush1.msra.mxu0 0.0
        %479 = vmatprep.subr.mxu0 0.0
        %480 = vmatpush1.msra.mxu0 0.0
        %481 = vmatprep.subr.mxu0 0.0
        %482 = vmatpush1.msra.mxu0 0.0
        %483 = vmatprep.subr.mxu0 0.0
        %484 = vmatpush1.msra.mxu0 0.0
        %485 = vmatprep.subr.mxu0 0.0
        %486 = vmatpush1.msra.mxu0 0.0
        %487 = vmatprep.subr.mxu0 0.0
        %488 = vmatpush1.msra.mxu0 0.0
        %489 = vmatprep.subr.mxu0 0.0
        %490 = vmatpush1.msra.mxu0 0.0
        %491 = vmatprep.subr.mxu0 0.0
        %492 = vmatpush1.msra.mxu0 0.0
        %493 = vmatprep.subr.mxu0 0.0
        %494 = vmatpush1.msra.mxu0 0.0
        %495 = vmatprep.subr.mxu0 0.0
        %496 = vmatpush1.msra.mxu0 0.0
        %497 = vmatprep.subr.mxu0 0.0
        %498 = vmatpush1.msra.mxu0 0.0
        %499 = vmatprep.mubr.f32.mxu0 0.0
        %500 = vmatmul.mubr.f32.gmra.mrb[0].mxu0 %v231
        %v501 = vpop.f32.mrb[0].mxu0
        %v502 = vadd.f32 0.0, %v501
        %v503 = vpop.f32.mrb[0].mxu0
        %504 = vmatprep.mubr.f32.mxu0 0.0
        %505 = vmatmul.mubr.f32.gmra.mrb[0].mxu0 %v234
        %v506 = vpop.f32.mrb[0].mxu0
        %v507 = vadd.f32 0.0, %v506
        %v508 = vpop.f32.mrb[0].mxu0
        %509 = vmatprep.mubr.f32.mxu0 0.0
        %510 = vmatmul.mubr.f32.gmra.mrb[0].mxu0 %v237
        %v511 = vpop.f32.mrb[0].mxu0
        %v512 = vadd.f32 0.0, %v511
        %v513 = vpop.f32.mrb[0].mxu0
        %514 = vmatprep.mubr.f32.mxu0 0.0
        %515 = vmatmul.mubr.f32.gmra.mrb[0].mxu0 %v240
        %v516 = vpop.f32.mrb[0].mxu0
        %v517 = vadd.f32 0.0, %v516
        %v518 = vpop.f32.mrb[0].mxu0
        %519 = vdwg.mxu0
        %v521 = vsel %vm229, %v502, 0
        %v524 = vsel %vm229, %v507, 0
        %v527 = vsel %vm229, %v512, 0
        %v530 = vsel %vm229, %v517, 0
        %532 = vmatprep.subr.mxu0 0.0
        %533 = vmatpush1.msra.mxu0 %v196
        %534 = vmatprep.subr.mxu0 0.0
        %535 = vmatpush1.msra.mxu0 %v197
        %536 = vmatprep.subr.mxu0 0.0
        %537 = vmatpush1.msra.mxu0 0.0
        %538 = vmatprep.subr.mxu0 0.0
        %539 = vmatpush1.msra.mxu0 0.0
        %540 = vmatprep.subr.mxu0 0.0
        %541 = vmatpush1.msra.mxu0 0.0
        %542 = vmatprep.subr.mxu0 0.0
        %543 = vmatpush1.msra.mxu0 0.0
        %544 = vmatprep.subr.mxu0 0.0
        %545 = vmatpush1.msra.mxu0 0.0
        %546 = vmatprep.subr.mxu0 0.0
        %547 = vmatpush1.msra.mxu0 0.0
        %548 = vmatprep.subr.mxu0 0.0
        %549 = vmatpush1.msra.mxu0 0.0
        %550 = vmatprep.subr.mxu0 0.0
        %551 = vmatpush1.msra.mxu0 0.0
        %552 = vmatprep.subr.mxu0 0.0
        %553 = vmatpush1.msra.mxu0 0.0
        %554 = vmatprep.subr.mxu0 0.0
        %555 = vmatpush1.msra.mxu0 0.0
        %556 = vmatprep.subr.mxu0 0.0
        %557 = vmatpush1.msra.mxu0 0.0
        %558 = vmatprep.subr.mxu0 0.0
        %559 = vmatpush1.msra.mxu0 0.0
        %560 = vmatprep.subr.mxu0 0.0
        %561 = vmatpush1.msra.mxu0 0.0
        %562 = vmatprep.subr.mxu0 0.0
        %563 = vmatpush1.msra.mxu0 0.0
        %564 = vmatprep.subr.mxu0 0.0
        %565 = vmatpush1.msra.mxu0 0.0
        %566 = vmatprep.subr.mxu0 0.0
        %567 = vmatpush1.msra.mxu0 0.0
        %568 = vmatprep.subr.mxu0 0.0
        %569 = vmatpush1.msra.mxu0 0.0
        %570 = vmatprep.subr.mxu0 0.0
        %571 = vmatpush1.msra.mxu0 0.0
        %572 = vmatprep.subr.mxu0 0.0
        %573 = vmatpush1.msra.mxu0 0.0
        %574 = vmatprep.subr.mxu0 0.0
        %575 = vmatpush1.msra.mxu0 0.0
        %576 = vmatprep.subr.mxu0 0.0
        %577 = vmatpush1.msra.mxu0 0.0
        %578 = vmatprep.subr.mxu0 0.0
        %579 = vmatpush1.msra.mxu0 0.0
        %580 = vmatprep.subr.mxu0 0.0
        %581 = vmatpush1.msra.mxu0 0.0
        %582 = vmatprep.subr.mxu0 0.0
        %583 = vmatpush1.msra.mxu0 0.0
        %584 = vmatprep.subr.mxu0 0.0
        %585 = vmatpush1.msra.mxu0 0.0
        %586 = vmatprep.subr.mxu0 0.0
        %587 = vmatpush1.msra.mxu0 0.0
        %588 = vmatprep.subr.mxu0 0.0
        %589 = vmatpush1.msra.mxu0 0.0
        %590 = vmatprep.subr.mxu0 0.0
        %591 = vmatpush1.msra.mxu0 0.0
        %592 = vmatprep.subr.mxu0 0.0
        %593 = vmatpush1.msra.mxu0 0.0
        %594 = vmatprep.subr.mxu0 0.0
        %595 = vmatpush1.msra.mxu0 0.0
        %596 = vmatprep.mubr.f32.mxu0 0.0
        %597 = vmatmul.mubr.f32.gmra.mrb[0].mxu0 %v521
        %v598 = vpop.f32.mrb[0].mxu0
        %v599 = vadd.f32 0.0, %v598
        %v600 = vpop.f32.mrb[0].mxu0
        %601 = vmatprep.mubr.f32.mxu0 0.0
        %602 = vmatmul.mubr.f32.gmra.mrb[0].mxu0 %v524
        %v603 = vpop.f32.mrb[0].mxu0
        %v604 = vadd.f32 0.0, %v603
        %v605 = vpop.f32.mrb[0].mxu0
        %606 = vmatprep.mubr.f32.mxu0 0.0
        %607 = vmatmul.mubr.f32.gmra.mrb[0].mxu0 %v527
        %v608 = vpop.f32.mrb[0].mxu0
        %v609 = vadd.f32 0.0, %v608
        %v610 = vpop.f32.mrb[0].mxu0
        %611 = vmatprep.mubr.f32.mxu0 0.0
        %612 = vmatmul.mubr.f32.gmra.mrb[0].mxu0 %v530
        %v613 = vpop.f32.mrb[0].mxu0
        %v614 = vadd.f32 0.0, %v613
        %v615 = vpop.f32.mrb[0].mxu0
        %616 = vdwg.mxu0
        %v617 = vsel %vm223, %v599, 0.5
        %v618 = vsel %vm224, %v604, 0.5
        %v619 = vsel %vm225, %v609, 0.5
        %v620 = vsel %vm226, %v614, 0.5
        %s621 = scalar_lea.vmem %s189, 32 [#allocation5]
        %622 = vst [vmem:[%s621] sm:$0xff] %v617
        %623 = vst [vmem:[%s621 + $0x8] sm:$0xff] %v618
        %624 = vst [vmem:[%s621 + $0x10] sm:$0xff] %v619
        %625 = vst [vmem:[%s621 + $0x18] sm:$0xff] %v620
        %s626 = sand.u32 %s96, 1
        %s627 = scalar_lea.sflag [#allocation4], %s626
        %s628 = sand.u32 %s96, 1
        %s629 = smul.addr %s628, 64
        %s630 = scalar_lea.vmem [#allocation5], %s629
        // Predicated region
        $region37: #{tpu_custom_call.1} parent=31 // pred_check
          %p631 = pneg %p106
        $region38: #{tpu_custom_call.1} parent=31 // pred_check_branch
          %633 = sbr.rel (%p631) target = $region40
        $region39: #{tpu_custom_call.1} parent=31 // pred_region
          %s634 = smul.u32 2, %s20
          %s636 = ssub.s32 1024, 1024
          %637 = vsyncadd %s627, %s636
          %s638 = smul.addr %s634, 4
          %s639 = smul.addr %s638, 128
          %s640 = scalar_lea.hbm %s3, %s639
          %s641 = sshll.u32 %s630, 4
          %s642 = int_to_ptr.vmem [resolvable:$true] %s641
          %647 = dma.vmem_to_hbm [thread:$0]  %s642, 1024, %s640, %s627, 128, 128, 8
        $region40: #{tpu_custom_call.1} parent=31 // pred_fallthru
          _
      $region32: #{tpu_custom_call.1} parent=5 // pred_fallthru
        _
      %p648 = scmp.le.s32.totalorder 2, %s15
      // Predicated region
      $region41: #{tpu_custom_call.1} parent=5 // pred_check
        %p649 = pneg %p648
      $region42: #{tpu_custom_call.1} parent=5 // pred_check_branch
        %651 = sbr.rel (%p649) target = $region44
      $region43: #{tpu_custom_call.1} parent=5 // pred_region
        %s652 = ssub.s32 %s15, 2
        // Predicated region
        $region45: #{tpu_custom_call.1} parent=43 // pred_check
          %p653 = pneg %p112
        $region46: #{tpu_custom_call.1} parent=43 // pred_check_branch
          %655 = sbr.rel (%p653) target = $region48
        $region47: #{tpu_custom_call.1} parent=43 // pred_region
          %s656 = sand.u32 %s97, 1
          %s657 = scalar_lea.sflag [#allocation4], %s656
          %s658 = sand.u32 %s97, 1
          %s659 = smul.addr %s658, 64
          %s660 = scalar_lea.vmem [#allocation5], %s659
          %661 = dma.done %s657, 1024
        $region48: #{tpu_custom_call.1} parent=43 // pred_fallthru
          _
      $region44: #{tpu_custom_call.1} parent=5 // pred_fallthru
        _
    $region6: #{tpu_custom_call.1} parent=1 // loop_footer
      %s19 = sadd.s32 1, %s15
    $region7: #{tpu_custom_call.1} parent=1 // loop_footer_branch
      %14 = sbr.rel target = $region3
    $region8: #{tpu_custom_call.1} parent=1 // loop_exit
      _
    %662 = vsyncpa [#allocation3], 1
    %s663 = scalar_lea.sflag [#allocation3], 1
    %664 = vsyncpa %s663, 1
    %665 = vsyncpa [#allocation4], 1
    %s666 = scalar_lea.sflag [#allocation4], 1
    %667 = vsyncpa %s666, 1

</llo_original>
